<compile_context>
chip_gen: v5e
topology: v5e:2x2
jax: 0.10.0
libtpu: 0.0.40
codegen_flags: <defaults>
</compile_context>

<pallas_src>
import functools

import jax
import jax.numpy as jnp
from jax.experimental import pallas as pl
from jax.experimental.pallas import tpu as pltpu

IN_FEATURES = 40
HID_FEATURES = 15
PACK = 16                       # rows folded together for the lane-dense path
PACKED_F = PACK * IN_FEATURES   # 640 = 5 * 128 lanes

_LANE = 128
_F32 = 4

_PLAIN_MAX_TB = 16384   # lane-padded streamed buffers: 4 * 16384*128*4 B = 32 MiB
_PACKED_MAX_TB = 1024   # = 16384 original rows; 4 * 1024*640*4 B = 10 MiB


def _round_up(n, m):
    return ((n + m - 1) // m) * m


# --------------------------------------------------------------------------- params
def fuse_params(w1, b1, w2, b2):
    """One-time fusion of the two nn.Linear layers into a single affine map.

    w1: (15, 40), b1: (15,), w2: (40, 15), b2: (40,)  (PyTorch nn.Linear layout)
    Returns Wc (40, 40), bc (1, 40) with y = x @ Wc + bc.  Exact up to f32 rounding.
    """
    wc = jnp.transpose(w1) @ jnp.transpose(w2)           # (40,15) @ (15,40) -> (40,40)
    bc = (b1 @ jnp.transpose(w2) + b2).reshape(1, -1)    # (1, 40)
    return wc.astype(jnp.float32), bc.astype(jnp.float32)


def pack_params(wc, bc, pack=PACK):
    """Block-diagonal packing for the lane-dense path: `pack` copies of Wc on the
    diagonal of a (pack*40, pack*40) matrix; bias tiled to (1, pack*40)."""
    eye = jnp.eye(pack, dtype=wc.dtype)
    wbd = jnp.einsum("pq,ij->piqj", eye, wc).reshape(pack * IN_FEATURES,
                                                     pack * IN_FEATURES)
    bbd = jnp.tile(bc, (1, pack))
    return wbd, bbd


def init_params(w1, b1, w2, b2):
    wc, bc = fuse_params(w1, b1, w2, b2)
    wbd, bbd = pack_params(wc, bc)
    return {"wc": wc, "bc": bc, "wbd": wbd, "bbd": bbd}


# --------------------------------------------------------------------------- kernel
def _affine_kernel(x_ref, w_ref, b_ref, out_ref):
    # (TB, F) @ (F, F) + (1, F) -> (TB, F): single MXU pass, f32 accumulation.
    out_ref[...] = (
        jnp.dot(x_ref[...], w_ref[...], preferred_element_type=jnp.float32)
        + b_ref[...]
    ).astype(out_ref.dtype)


def _pick_tile_rows(n_rows, *, max_rows, min_rows, min_steps=8):
    """Row tile: multiple of 8; >= min_rows unless the array is smaller (amortize the
    ~0.35 us/step overhead); <= max_rows (VMEM budget); aim for >= min_steps grid
    steps on large inputs so both TensorCores keep overlapped double-buffering."""
    full = _round_up(n_rows, 8)
    tb = _round_up(pl.cdiv(n_rows, min_steps), 8)
    tb = max(tb, min_rows)
    return max(8, min(tb, max_rows, full))


def _vmem_limit(tile_rows, feat):
    """Scoped-VMEM request from *lane-padded* tile sizes (40 lanes pad to 128)."""
    lanes = _round_up(feat, _LANE)
    x_tile = tile_rows * lanes * _F32                 # one streamed buffer
    w_buf = _round_up(feat, 8) * lanes * _F32
    b_buf = 8 * lanes * _F32
    need = 4 * x_tile + 2 * (w_buf + b_buf)           # 2x double-buffered in + out
    # Margin for compiler-internal scratch; cap under v7x's 64 MiB physical VMEM.
    return int(min(max(int(need * 1.25) + (2 << 20), 16 << 20), 60 << 20))


def _run_affine(x2d, w, b, *, tile_rows):
    rows, feat = x2d.shape
    # Last block may be partial: Pallas drops OOB writes; OOB reads only feed rows
    # whose writes are dropped.  No pad / slice passes over HBM.
    grid = (pl.cdiv(rows, tile_rows),)
    return pl.pallas_call(
        _affine_kernel,
        out_shape=jax.ShapeDtypeStruct((rows, feat), x2d.dtype),
        grid=grid,
        in_specs=[
            pl.BlockSpec((tile_rows, feat), lambda i: (i, 0)),   # x: streamed
            pl.BlockSpec((feat, feat), lambda i: (0, 0)),        # W: VMEM-resident
            pl.BlockSpec((1, feat), lambda i: (0, 0)),           # b: VMEM-resident
        ],
        out_specs=pl.BlockSpec((tile_rows, feat), lambda i: (i, 0)),
        compiler_params=pltpu.CompilerParams(
            dimension_semantics=("parallel",),     # shard batch across TCs (megacore)
            vmem_limit_bytes=_vmem_limit(tile_rows, feat),
        ),
        cost_estimate=pl.CostEstimate(
            flops=2 * rows * feat * feat,
            transcendentals=0,
            bytes_accessed=2 * rows * feat * _F32 + feat * feat * _F32 + feat * _F32,
        ),
    )(x2d, w, b)


# --------------------------------------------------------------------------- wrappers
@jax.jit
def _forward_plain(x, wc, bc):
    B = x.shape[0]
    tb = _pick_tile_rows(B, max_rows=_PLAIN_MAX_TB, min_rows=512)
    return _run_affine(x, wc, bc, tile_rows=tb)


@jax.jit
def _forward_packed(x, wbd, bbd):
    B = x.shape[0]
    rows = B // PACK
    xp = x.reshape(rows, PACKED_F)   # free row-major view: 16 rows -> 640 dense lanes
    tb = _pick_tile_rows(rows, max_rows=_PACKED_MAX_TB, min_rows=256)
    out = _run_affine(xp, wbd, bbd, tile_rows=tb)
    return out.reshape(B, IN_FEATURES)


@functools.lru_cache(maxsize=1)
def _lane_dense_ok():
    # Block-diagonal packing trades 16x MXU MACs for lane-dense I/O: a win on v6e/v7x,
    # but it would flip v5-class chips compute-bound, so keep those on the plain path.
    try:
        kind = jax.devices()[0].device_kind.lower()
    except Exception:
        return True
    return "v5" not in kind


def autoencoder_x2(x, params):
    """Forward pass equivalent to AutoencoderX2: x (B, 40) f32 -> (B, 40) f32."""
    if x.shape[0] % PACK == 0 and _lane_dense_ok():
        return _forward_packed(x, params["wbd"], params["bbd"])
    return _forward_plain(x, params["wc"], params["bc"])


# --------------------------------------------------------------------------- test
def _reference(x, w1, b1, w2, b2):
    enc = x @ w1.T + b1
    return enc @ w2.T + b2


if __name__ == "__main__":
    key = jax.random.PRNGKey(0)
    k_x, k_w1, k_b1, k_w2, k_b2 = jax.random.split(key, 5)

    # Deterministic synthetic parameters (nn.Linear layout: weight (out, in), bias (out,))
    w1 = jax.random.normal(k_w1, (HID_FEATURES, IN_FEATURES), dtype=jnp.float32) * 0.1
    b1 = jax.random.normal(k_b1, (HID_FEATURES,), dtype=jnp.float32) * 0.1
    w2 = jax.random.normal(k_w2, (IN_FEATURES, HID_FEATURES), dtype=jnp.float32) * 0.1
    b2 = jax.random.normal(k_b2, (IN_FEATURES,), dtype=jnp.float32) * 0.1

    # One-time parameter fusion / packing (done at "load" time, not per forward).
    params = init_params(w1, b1, w2, b2)

    # B=8: plain path; B=13: partial-block (no pad/slice) path; B=64: lane-dense path.
    for i, batch in enumerate((8, 13, 64)):
        xb = jax.random.normal(jax.random.PRNGKey(i), (batch, IN_FEATURES),
                               dtype=jnp.float32)
        out = jax.block_until_ready(autoencoder_x2(xb, params))
        ref = _reference(xb, w1, b1, w2, b2)
        assert out.shape == (batch, IN_FEATURES), out.shape
        assert jnp.allclose(out, ref, atol=5e-3, rtol=5e-3), f"mismatch at B={batch}"

    print("KERNEL_OK")
</pallas_src>

<mosaic_0001>
module attributes {stable_mosaic.version = 11 : i64} {
  func.func @_affine_kernel(%arg0: i32, %arg1: memref<8x40xf32, #tpu.memory_space<vmem>>, %arg2: memref<40x40xf32, #tpu.memory_space<vmem>>, %arg3: memref<1x40xf32, #tpu.memory_space<vmem>>, %arg4: memref<8x40xf32, #tpu.memory_space<vmem>>) attributes {dimension_semantics = [#tpu.dimension_semantics<parallel>], iteration_bounds = array<i64: 1>, scalar_prefetch = 0 : i64, scratch_operands = 0 : i64, tpu.core_type = #tpu.core_type<tc>, window_params = [{transform_indices = @transform_0, window_bounds = array<i64: 8, 40>}, {pipeline_mode = #tpu.pipeline_mode<synchronous>, transform_indices = @transform_1, window_bounds = array<i64: 40, 40>}, {pipeline_mode = #tpu.pipeline_mode<synchronous>, transform_indices = @transform_2, window_bounds = array<i64: 1, 40>}, {transform_indices = @transform_3, window_bounds = array<i64: 8, 40>}]} {
    %c0 = arith.constant 0 : index
    %c0_0 = arith.constant 0 : index
    %0 = vector.load %arg1[%c0, %c0_0] : memref<8x40xf32, #tpu.memory_space<vmem>>, vector<8x40xf32>
    %c0_1 = arith.constant 0 : index
    %c0_2 = arith.constant 0 : index
    %1 = vector.load %arg2[%c0_1, %c0_2] : memref<40x40xf32, #tpu.memory_space<vmem>>, vector<40x40xf32>
    %cst = arith.constant dense<0.000000e+00> : vector<8x40xf32>
    %2 = tpu.matmul %0, %1, %cst {dimension_numbers = #tpu.dot_dimension_numbers<[1], [0], [0], [1], [0, 0, 1, 1], [], []>} : vector<8x40xf32>, vector<40x40xf32>, vector<8x40xf32> -> vector<8x40xf32>
    %c0_3 = arith.constant 0 : index
    %c0_4 = arith.constant 0 : index
    %3 = vector.load %arg3[%c0_3, %c0_4] : memref<1x40xf32, #tpu.memory_space<vmem>>, vector<1x40xf32>
    %4 = vector.broadcast %3 : vector<1x40xf32> to vector<8x40xf32>
    %5 = arith.addf %2, %4 : vector<8x40xf32>
    %c0_5 = arith.constant 0 : index
    %c0_6 = arith.constant 0 : index
    %6 = vector.load %arg4[%c0_5, %c0_6] : memref<8x40xf32, #tpu.memory_space<vmem>>, vector<8x40xf32>
    tpu.vector_store %arg4[%c0_5, %c0_6], %5 {strides = array<i32>} : memref<8x40xf32, #tpu.memory_space<vmem>>, vector<8x40xf32>,
    return
  }
  func.func @transform_0(%arg0: i32) -> (i32, i32) {
    %c0_i32 = arith.constant 0 : i32
    %c0_i32_0 = arith.constant 0 : i32
    return %arg0, %c0_i32 : i32, i32
  }
  func.func @transform_1(%arg0: i32) -> (i32, i32) {
    %c0_i32 = arith.constant 0 : i32
    %c0_i32_0 = arith.constant 0 : i32
    %c0_i32_1 = arith.constant 0 : i32
    return %c0_i32, %c0_i32_0 : i32, i32
  }
  func.func @transform_2(%arg0: i32) -> (i32, i32) {
    %c0_i32 = arith.constant 0 : i32
    %c0_i32_0 = arith.constant 0 : i32
    %c0_i32_1 = arith.constant 0 : i32
    return %c0_i32, %c0_i32_0 : i32, i32
  }
  func.func @transform_3(%arg0: i32) -> (i32, i32) {
    %c0_i32 = arith.constant 0 : i32
    %c0_i32_0 = arith.constant 0 : i32
    return %arg0, %c0_i32 : i32, i32
  }
}

</mosaic_0001>

<llo_original>
// kernel: _forward_plain.1
$region0: #{_forward_plain.1}
  #allocation0 [shape = 'u32[]', space=smem, size = 0x4, offset = 0x4, fixed_abs, tag = 'smem constant byte address 0x4 - core index']
  #allocation1 [shape = 'u32[72,128]{1,0:T(1,128)}', space=vmem, size = 0x9000, scoped, tag = 'internal scratch']
  %s0 = inlined_call_operand.hbm [shape: f32[8,40], index: 0, kind: input, shape index: {}]
  %s1 = inlined_call_operand.hbm [shape: f32[40,40], index: 1, kind: input, shape index: {}]
  %s2 = inlined_call_operand.vmem [shape: f32[1,40], index: 2, kind: input, shape index: {}]
  %s3 = inlined_call_operand.hbm [shape: f32[8,40], index: 3, kind: output, shape index: {}]
  %s4 = sld [smem:[#allocation0]]
  $region30: #{_forward_plain.1} parent=0
    _
  %s6 = ssub.s32 1, %s4
  %s7 = scalar_select 0, %s6, %s4
  $region1: #{_forward_plain.1} parent=0
    #allocation2 [shape = 'u8[4096]{0}', space=vmem, size = 0x1000, scoped, tag = 'input window, operand 0, single buffered']
    #allocation3 [shape = 's32[1]{0}', space=sflag, size = 0x4, scoped, tag = 'scoped memory for _forward_plain.1']
    #allocation4 [shape = 's32[1]{0}', space=sflag, size = 0x4, scoped, tag = 'scoped memory for _forward_plain.1']
    #allocation5 [shape = 'u8[20480]{0}', space=vmem, size = 0x5000, scoped, tag = 'input window, operand 1, single buffered']
    #allocation6 [shape = 's32[1]{0}', space=sflag, size = 0x4, scoped, tag = 'scoped memory for _forward_plain.1']
    #allocation7 [shape = 'u8[4096]{0}', space=vmem, size = 0x1000, scoped, tag = 'output window, operand 0, single buffered']
    %8 = vsyncpa [#allocation3], 0
    %9 = vsyncpa [#allocation6], 0
    %10 = vsyncpa [#allocation4], 0
    // Predicated region
    $region2: #{_forward_plain.1} parent=1 // pred_check
      _
    $region3: #{_forward_plain.1} parent=1 // pred_check_branch
      %12 = sbr.rel (0) target = $region5
    $region4: #{_forward_plain.1} parent=1 // pred_region
      %14 = vsyncadd [#allocation3], 0
      %s16 = sshll.u32 %s0, 4
      %s17 = int_to_ptr.hbm [resolvable:$true] %s16
      %s18 = sshll.u32 [#allocation2], 4
      %s19 = int_to_ptr.vmem [resolvable:$true] %s18
      %21 = dma.hbm_to_vmem [thread:$0]  %s17, 128, %s19, [#allocation3]
    $region5: #{_forward_plain.1} parent=1 // pred_fallthru
      _
    // Predicated region
    $region6: #{_forward_plain.1} parent=1 // pred_check
      _
    $region7: #{_forward_plain.1} parent=1 // pred_check_branch
      %23 = sbr.rel (0) target = $region9
    $region8: #{_forward_plain.1} parent=1 // pred_region
      %25 = vsyncadd [#allocation6], 0
      %s26 = sshll.u32 %s1, 4
      %s27 = int_to_ptr.hbm [resolvable:$true] %s26
      %s28 = sshll.u32 [#allocation5], 4
      %s29 = int_to_ptr.vmem [resolvable:$true] %s28
      %34 = dma.hbm_to_vmem [thread:$0]  %s27, 640, %s29, [#allocation6], 128, 128, 8
    $region9: #{_forward_plain.1} parent=1 // pred_fallthru
      _
    // Predicated region
    $region10: #{_forward_plain.1} parent=1 // pred_check
      _
    $region11: #{_forward_plain.1} parent=1 // pred_check_branch
      %36 = sbr.rel (0) target = $region13
    $region12: #{_forward_plain.1} parent=1 // pred_region
      _
    $region13: #{_forward_plain.1} parent=1 // pred_fallthru
      _
    // Predicated region
    $region14: #{_forward_plain.1} parent=1 // pred_check
      _
    $region15: #{_forward_plain.1} parent=1 // pred_check_branch
      %38 = sbr.rel (0) target = $region17
    $region16: #{_forward_plain.1} parent=1 // pred_region
      %40 = dma.done [#allocation3], 128
    $region17: #{_forward_plain.1} parent=1 // pred_fallthru
      _
    // Predicated region
    $region18: #{_forward_plain.1} parent=1 // pred_check
      _
    $region19: #{_forward_plain.1} parent=1 // pred_check_branch
      %42 = sbr.rel (0) target = $region21
    $region20: #{_forward_plain.1} parent=1 // pred_region
      %44 = dma.done [#allocation6], 640
    $region21: #{_forward_plain.1} parent=1 // pred_fallthru
      _
    %v45 = vld [vmem:[#allocation2] sm:$0xff]
    %v46 = vld [vmem:[#allocation5] sm:$0xff]
    %v47 = vld [vmem:[#allocation5 + $0x8] sm:$0xff]
    %v48 = vld [vmem:[#allocation5 + $0x10] sm:$0xff]
    %v49 = vld [vmem:[#allocation5 + $0x18] sm:$0xff]
    %v50 = vld [vmem:[#allocation5 + $0x20] sm:$0xff]
    %v51 = vld [vmem:[%s2] sm:$0x1]
    %v53 = vperm.slane %v51, 0
    %vm55 = vcmask 326656
    %v57 = vsel %vm55, %v45, 0
    %59 = vmatpush.msra.mxu0 0.0
    %60 = vmatpush.msra.mxu0 0.0
    %61 = vmatpush.msra.mxu0 0.0
    %62 = vmatpush.msra.mxu0 0.0
    %63 = vmatpush.msra.mxu0 0.0
    %64 = vmatpush.msra.mxu0 0.0
    %65 = vmatpush.msra.mxu0 0.0
    %66 = vmatpush.msra.mxu0 0.0
    %67 = vmatpush.msra.mxu0 0.0
    %68 = vmatpush.msra.mxu0 0.0
    %69 = vmatpush.msra.mxu0 0.0
    %70 = vmatpush.msra.mxu0 %v50
    %71 = vmatpush.msra.mxu0 %v49
    %72 = vmatpush.msra.mxu0 %v48
    %73 = vmatpush.msra.mxu0 %v47
    %74 = vmatpush.msra.mxu0 %v46
    %75 = vmatmul.f32.gmra.mxu0 %v57
    %v76 = vpop.f32.mrf.mxu0
    %v77 = vadd.f32 %v53, %v76
    %78 = vdwg.mxu0
    %79 = vst.msk [vmem:[#allocation7] sm:$0xff] %vm55, %v77
    // Predicated region
    $region22: #{_forward_plain.1} parent=1 // pred_check
      _
    $region23: #{_forward_plain.1} parent=1 // pred_check_branch
      %81 = sbr.rel (0) target = $region25
    $region24: #{_forward_plain.1} parent=1 // pred_region
      %83 = vsyncadd [#allocation4], 0
      %s85 = sshll.u32 [#allocation7], 4
      %s86 = int_to_ptr.vmem [resolvable:$true] %s85
      %s87 = sshll.u32 %s3, 4
      %s88 = int_to_ptr.hbm [resolvable:$true] %s87
      %90 = dma.vmem_to_hbm [thread:$0]  %s86, 128, %s88, [#allocation4]
    $region25: #{_forward_plain.1} parent=1 // pred_fallthru
      _
    // Predicated region
    $region26: #{_forward_plain.1} parent=1 // pred_check
      _
    $region27: #{_forward_plain.1} parent=1 // pred_check_branch
      %92 = sbr.rel (0) target = $region29
    $region28: #{_forward_plain.1} parent=1 // pred_region
      %94 = dma.done [#allocation4], 128
    $region29: #{_forward_plain.1} parent=1 // pred_fallthru
      _
    %95 = vsyncpa [#allocation3], 1
    %96 = vsyncpa [#allocation6], 1
    %97 = vsyncpa [#allocation4], 1

</llo_original>
